<compile_context>
chip_gen: v5e
topology: v5e:2x2
jax: 0.10.0
libtpu: 0.0.40
codegen_flags: <defaults>
</compile_context>

<pallas_src>
import functools

import jax
import jax.numpy as jnp
from jax.experimental import pallas as pl
from jax.experimental.pallas import tpu as pltpu


# --------------------------------------------------------------------------
# Kernels
# --------------------------------------------------------------------------
def _ffn_kernel_fused(x_ref, w1_ref, b1_ref, w2_ref, b2_ref, o_ref):
    """Single d_ff pass: whole FFN fused, no accumulator carry."""
    # x_ref: (tm, d_model)  w1_ref: (d_model, d_ff)  w2_ref: (d_ff, d_model)
    h = jnp.dot(x_ref[...], w1_ref[...], preferred_element_type=jnp.float32)
    h = jnp.maximum(h + b1_ref[...], 0.0)          # fused bias + ReLU (f32)
    y = jnp.dot(h.astype(w2_ref.dtype), w2_ref[...],
                preferred_element_type=jnp.float32)
    o_ref[...] = (y + b2_ref[...]).astype(o_ref.dtype)


def _ffn_kernel_acc(x_ref, w1_ref, b1_ref, w2_ref, b2_ref, o_ref, acc_ref):
    """d_ff-tiled reduction with a resident f32 accumulator."""
    # x_ref:   (tm, d_model)   compute dtype (bf16 by default)
    # w1_ref:  (d_model, tf)   compute dtype
    # b1_ref:  (1, tf)         f32
    # w2_ref:  (tf, d_model)   compute dtype
    # b2_ref:  (1, d_model)    f32
    # o_ref:   (tm, d_model)   output dtype
    # acc_ref: (tm, d_model)   f32 scratch accumulator carried over the k axis
    k = pl.program_id(1)

    @pl.when(k == 0)
    def _init():
        # Fold the second bias into the accumulator init (one broadcast/tile).
        acc_ref[...] = jnp.broadcast_to(b2_ref[...], acc_ref.shape)

    # First matmul slice on the MXU with f32 accumulation.
    h = jnp.dot(x_ref[...], w1_ref[...], preferred_element_type=jnp.float32)
    # Fused bias + ReLU in f32 (dropout = identity in eval mode).
    h = jnp.maximum(h + b1_ref[...], 0.0)
    # Second matmul slice: accumulate this d_ff tile's partial contribution.
    acc_ref[...] += jnp.dot(h.astype(w2_ref.dtype), w2_ref[...],
                            preferred_element_type=jnp.float32)

    @pl.when(k == pl.num_programs(1) - 1)
    def _finalize():
        o_ref[...] = acc_ref[...].astype(o_ref.dtype)


# --------------------------------------------------------------------------
# Tile selection / VMEM budgeting helpers
# --------------------------------------------------------------------------
def _round_up(x, m):
    return (x + m - 1) // m * m


def _pad2(r, c, itemsize):
    """Padded-tile bytes: rows to 16 sublanes (covers bf16 packing), cols to 128."""
    return _round_up(max(r, 1), 16) * _round_up(max(c, 1), 128) * itemsize


def _choose_tf(d_ff, d_model, tm, cb, budget_bytes=24 * 2**20):
    """Largest multiple-of-128 divisor of d_ff whose per-step footprint fits."""
    if d_ff % 128 != 0:
        return d_ff  # irregular d_ff: single full-width reduction pass

    def footprint(tf):
        return (2 * _pad2(d_model, tf, cb)        # w1 slice, double-buffered
                + 2 * _pad2(tf, d_model, cb)      # w2 slice, double-buffered
                + 2 * _pad2(1, tf, 4)             # b1 slice
                + _pad2(tm, tf, 4)                # f32 intermediate h
                + 2 * _pad2(tm, d_model, cb)      # x tile
                + 2 * _pad2(tm, d_model, cb)      # out tile (upper bound)
                + 2 * _pad2(1, d_model, 4)        # b2
                + _pad2(tm, d_model, 4))          # accumulator

    divisors = [d for d in range(128, d_ff + 1, 128) if d_ff % d == 0]
    for tf in sorted(divisors, reverse=True):
        if footprint(tf) <= budget_bytes:
            return tf
    return 128


def prepare_ffn_params(w1, b1, w2, b2, compute_dtype=jnp.bfloat16):
    """One-time, OUTSIDE the hot path: transpose nn.Linear weights to (in, out)
    layout, cast to the MXU compute dtype, make biases 2D f32."""
    w1_t = jnp.asarray(w1).T.astype(compute_dtype)               # (d_model, d_ff)
    w2_t = jnp.asarray(w2).T.astype(compute_dtype)               # (d_ff, d_model)
    b1_2d = jnp.asarray(b1).reshape(1, -1).astype(jnp.float32)   # (1, d_ff)
    b2_2d = jnp.asarray(b2).reshape(1, -1).astype(jnp.float32)   # (1, d_model)
    return w1_t, b1_2d, w2_t, b2_2d


# --------------------------------------------------------------------------
# Wrapper
# --------------------------------------------------------------------------
@functools.partial(jax.jit, static_argnames=("tm", "tf"))
def positionwise_ffn(x, w1_t, b1_2d, w2_t, b2_2d, *, tm=None, tf=None):
    """x: (B, S, d_model); params from prepare_ffn_params (already (in,out))."""
    B, S, d_model = x.shape
    d_ff = w1_t.shape[1]
    out_dtype = x.dtype
    compute_dtype = w1_t.dtype
    cb = jnp.dtype(compute_dtype).itemsize
    ob = jnp.dtype(out_dtype).itemsize

    M = B * S
    x2 = x.reshape(M, d_model).astype(compute_dtype)

    # --- tile selection --------------------------------------------------
    if tm is None:
        # 256-row tiles fill the v6e/v7x 2x256x256 MXU; on v5e (4x128x128 MXU)
        # pass tm=128 explicitly.
        tm = 256 if M >= 256 else _round_up(M, 8)
    if tf is None:
        tf = _choose_tf(d_ff, d_model, tm, cb)
    assert d_ff % tf == 0, (d_ff, tf)
    n_k = d_ff // tf

    M_pad = _round_up(M, tm)
    if M_pad != M:
        x2 = jnp.pad(x2, ((0, M_pad - M), (0, 0)))
    n_rows = M_pad // tm

    # --- explicit VMEM budget (pipeline double-buffers each block) --------
    tile_bytes = 2 * (_pad2(tm, d_model, cb)      # x tile
                      + _pad2(d_model, tf, cb)    # w1 slice
                      + _pad2(tf, d_model, cb)    # w2 slice
                      + _pad2(1, tf, 4)           # b1 slice
                      + _pad2(1, d_model, 4)      # b2
                      + _pad2(tm, d_model, ob))   # out tile
    tile_bytes += _pad2(tm, tf, 4)                # f32 intermediate h
    if n_k > 1:
        tile_bytes += _pad2(tm, d_model, 4)       # f32 accumulator scratch
    # >=16 MiB floor, <=56 MiB ceiling so it also fits v7x's 64 MiB/TC VMEM.
    vmem_limit = int(min(max(int(tile_bytes * 1.5), 16 * 2**20), 56 * 2**20))

    if n_k == 1:
        # Fused single-pass: no accumulator round trip, no pl.when branches.
        out2 = pl.pallas_call(
            _ffn_kernel_fused,
            out_shape=jax.ShapeDtypeStruct((M_pad, d_model), out_dtype),
            grid_spec=pltpu.PrefetchScalarGridSpec(
                num_scalar_prefetch=0,
                grid=(n_rows,),
                in_specs=[
                    pl.BlockSpec((tm, d_model), lambda i: (i, 0)),    # x rows
                    pl.BlockSpec((d_model, d_ff), lambda i: (0, 0)),  # w1
                    pl.BlockSpec((1, d_ff), lambda i: (0, 0)),        # b1
                    pl.BlockSpec((d_ff, d_model), lambda i: (0, 0)),  # w2
                    pl.BlockSpec((1, d_model), lambda i: (0, 0)),     # b2
                ],
                out_specs=pl.BlockSpec((tm, d_model), lambda i: (i, 0)),
            ),
            compiler_params=pltpu.CompilerParams(
                dimension_semantics=("parallel",),
                vmem_limit_bytes=vmem_limit,
            ),
        )(x2, w1_t, b1_2d, w2_t, b2_2d)
    else:
        out2 = pl.pallas_call(
            _ffn_kernel_acc,
            out_shape=jax.ShapeDtypeStruct((M_pad, d_model), out_dtype),
            grid_spec=pltpu.PrefetchScalarGridSpec(
                num_scalar_prefetch=0,
                grid=(n_rows, n_k),
                in_specs=[
                    pl.BlockSpec((tm, d_model), lambda i, k: (i, 0)),   # x rows
                    pl.BlockSpec((d_model, tf), lambda i, k: (0, k)),   # w1 slice
                    pl.BlockSpec((1, tf), lambda i, k: (0, k)),         # b1 slice
                    pl.BlockSpec((tf, d_model), lambda i, k: (k, 0)),   # w2 slice
                    pl.BlockSpec((1, d_model), lambda i, k: (0, 0)),    # b2
                ],
                out_specs=pl.BlockSpec((tm, d_model), lambda i, k: (i, 0)),
                scratch_shapes=[pltpu.VMEM((tm, d_model), jnp.float32)],
            ),
            compiler_params=pltpu.CompilerParams(
                dimension_semantics=("parallel", "arbitrary"),
                vmem_limit_bytes=vmem_limit,
            ),
        )(x2, w1_t, b1_2d, w2_t, b2_2d)

    return out2[:M].reshape(B, S, d_model)


# --------------------------------------------------------------------------
# Reference + self-test
# --------------------------------------------------------------------------
def _reference(x, w1, b1, w2, b2):
    h = jnp.maximum(jnp.einsum("bsd,fd->bsf", x, w1) + b1, 0.0)
    return jnp.einsum("bsf,df->bsd", h, w2) + b2


if __name__ == "__main__":
    key = jax.random.PRNGKey(0)

    # ---- small shapes consistent with the module: B=2, S=8, d_model=32, d_ff=64
    B, S, d_model, d_ff = 2, 8, 32, 64
    kx, k1, k2, k3, k4, k5 = jax.random.split(key, 6)

    x = jax.random.normal(kx, (B, S, d_model), dtype=jnp.float32)
    # nn.Linear layout: weights are (out_features, in_features).
    w1 = jax.random.normal(k1, (d_ff, d_model), dtype=jnp.float32) * 0.05
    b1 = jax.random.normal(k2, (d_ff,), dtype=jnp.float32) * 0.05
    w2 = jax.random.normal(k3, (d_model, d_ff), dtype=jnp.float32) * 0.05
    b2 = jax.random.normal(k4, (d_model,), dtype=jnp.float32) * 0.05

    ref = _reference(x, w1, b1, w2, b2)

    # f32 compute path (fused single-pass kernel): tight check.
    params_f32 = prepare_ffn_params(w1, b1, w2, b2, compute_dtype=jnp.float32)
    out_f32 = jax.block_until_ready(positionwise_ffn(x, *params_f32))
    assert out_f32.shape == (B, S, d_model)
    assert jnp.allclose(out_f32, ref, atol=1e-5, rtol=1e-5), "f32 mismatch vs reference"

    # bf16 compute path (production default: bf16 MXU, f32 accumulation).
    params_bf16 = prepare_ffn_params(w1, b1, w2, b2, compute_dtype=jnp.bfloat16)
    out_bf16 = jax.block_until_ready(positionwise_ffn(x, *params_bf16))
    assert out_bf16.shape == (B, S, d_model)
    assert jnp.allclose(out_bf16, ref, atol=3e-2, rtol=3e-2), "bf16 mismatch vs reference"

    # ---- second (still small) shape that exercises the d_ff-tiled accumulator path
    B2, S2, dm2, dff2 = 2, 64, 128, 256
    kx2, kw1, kb1, kw2, kb2 = jax.random.split(k5, 5)
    x_b = jax.random.normal(kx2, (B2, S2, dm2), dtype=jnp.float32)
    w1_b = jax.random.normal(kw1, (dff2, dm2), dtype=jnp.float32) * 0.05
    b1_b = jax.random.normal(kb1, (dff2,), dtype=jnp.float32) * 0.05
    w2_b = jax.random.normal(kw2, (dm2, dff2), dtype=jnp.float32) * 0.05
    b2_b = jax.random.normal(kb2, (dm2,), dtype=jnp.float32) * 0.05

    ref_b = _reference(x_b, w1_b, b1_b, w2_b, b2_b)
    params_b = prepare_ffn_params(w1_b, b1_b, w2_b, b2_b, compute_dtype=jnp.float32)
    # Force tf=128 so the accumulator / pl.when carry path runs (d_ff=256 -> 2 k-steps).
    out_b = jax.block_until_ready(positionwise_ffn(x_b, *params_b, tf=128))
    assert out_b.shape == (B2, S2, dm2)
    assert jnp.allclose(out_b, ref_b, atol=1e-4, rtol=1e-4), "tiled-reduction mismatch"

    print("KERNEL_OK")
</pallas_src>

<mosaic_0001>
module attributes {stable_mosaic.version = 11 : i64} {
  func.func @_ffn_kernel_fused(%arg0: i32, %arg1: memref<16x32xf32, #tpu.memory_space<vmem>>, %arg2: memref<32x64xf32, #tpu.memory_space<vmem>>, %arg3: memref<1x64xf32, #tpu.memory_space<vmem>>, %arg4: memref<64x32xf32, #tpu.memory_space<vmem>>, %arg5: memref<1x32xf32, #tpu.memory_space<vmem>>, %arg6: memref<16x32xf32, #tpu.memory_space<vmem>>) attributes {dimension_semantics = [#tpu.dimension_semantics<parallel>], iteration_bounds = array<i64: 1>, scalar_prefetch = 0 : i64, scratch_operands = 0 : i64, tpu.core_type = #tpu.core_type<tc>, window_params = [{transform_indices = @transform_0, window_bounds = array<i64: 16, 32>}, {pipeline_mode = #tpu.pipeline_mode<synchronous>, transform_indices = @transform_1, window_bounds = array<i64: 32, 64>}, {pipeline_mode = #tpu.pipeline_mode<synchronous>, transform_indices = @transform_2, window_bounds = array<i64: 1, 64>}, {pipeline_mode = #tpu.pipeline_mode<synchronous>, transform_indices = @transform_3, window_bounds = array<i64: 64, 32>}, {pipeline_mode = #tpu.pipeline_mode<synchronous>, transform_indices = @transform_4, window_bounds = array<i64: 1, 32>}, {transform_indices = @transform_5, window_bounds = array<i64: 16, 32>}]} {
    %c0 = arith.constant 0 : index
    %c0_0 = arith.constant 0 : index
    %0 = vector.load %arg1[%c0, %c0_0] : memref<16x32xf32, #tpu.memory_space<vmem>>, vector<16x32xf32>
    %c0_1 = arith.constant 0 : index
    %c0_2 = arith.constant 0 : index
    %1 = vector.load %arg2[%c0_1, %c0_2] : memref<32x64xf32, #tpu.memory_space<vmem>>, vector<32x64xf32>
    %cst = arith.constant dense<0.000000e+00> : vector<16x64xf32>
    %2 = tpu.matmul %0, %1, %cst {dimension_numbers = #tpu.dot_dimension_numbers<[1], [0], [0], [1], [0, 0, 1, 1], [], []>} : vector<16x32xf32>, vector<32x64xf32>, vector<16x64xf32> -> vector<16x64xf32>
    %c0_3 = arith.constant 0 : index
    %c0_4 = arith.constant 0 : index
    %3 = vector.load %arg3[%c0_3, %c0_4] : memref<1x64xf32, #tpu.memory_space<vmem>>, vector<1x64xf32>
    %4 = vector.broadcast %3 : vector<1x64xf32> to vector<16x64xf32>
    %5 = arith.addf %2, %4 : vector<16x64xf32>
    %cst_5 = arith.constant 0.000000e+00 : f32
    %6 = vector.broadcast %cst_5 : f32 to vector<16x64xf32>
    %7 = arith.maximumf %5, %6 : vector<16x64xf32>
    %c0_6 = arith.constant 0 : index
    %c0_7 = arith.constant 0 : index
    %8 = vector.load %arg4[%c0_6, %c0_7] : memref<64x32xf32, #tpu.memory_space<vmem>>, vector<64x32xf32>
    %cst_8 = arith.constant dense<0.000000e+00> : vector<16x32xf32>
    %9 = tpu.matmul %7, %8, %cst_8 {dimension_numbers = #tpu.dot_dimension_numbers<[1], [0], [0], [1], [0, 0, 1, 1], [], []>} : vector<16x64xf32>, vector<64x32xf32>, vector<16x32xf32> -> vector<16x32xf32>
    %c0_9 = arith.constant 0 : index
    %c0_10 = arith.constant 0 : index
    %10 = vector.load %arg5[%c0_9, %c0_10] : memref<1x32xf32, #tpu.memory_space<vmem>>, vector<1x32xf32>
    %11 = vector.broadcast %10 : vector<1x32xf32> to vector<16x32xf32>
    %12 = arith.addf %9, %11 : vector<16x32xf32>
    %c0_11 = arith.constant 0 : index
    %c0_12 = arith.constant 0 : index
    %13 = vector.load %arg6[%c0_11, %c0_12] : memref<16x32xf32, #tpu.memory_space<vmem>>, vector<16x32xf32>
    tpu.vector_store %arg6[%c0_11, %c0_12], %12 {strides = array<i32>} : memref<16x32xf32, #tpu.memory_space<vmem>>, vector<16x32xf32>,
    return
  }
  func.func @transform_0(%arg0: i32) -> (i32, i32) {
    %c0_i32 = arith.constant 0 : i32
    %c0_i32_0 = arith.constant 0 : i32
    return %arg0, %c0_i32 : i32, i32
  }
  func.func @transform_1(%arg0: i32) -> (i32, i32) {
    %c0_i32 = arith.constant 0 : i32
    %c0_i32_0 = arith.constant 0 : i32
    %c0_i32_1 = arith.constant 0 : i32
    return %c0_i32, %c0_i32_0 : i32, i32
  }
  func.func @transform_2(%arg0: i32) -> (i32, i32) {
    %c0_i32 = arith.constant 0 : i32
    %c0_i32_0 = arith.constant 0 : i32
    %c0_i32_1 = arith.constant 0 : i32
    return %c0_i32, %c0_i32_0 : i32, i32
  }
  func.func @transform_3(%arg0: i32) -> (i32, i32) {
    %c0_i32 = arith.constant 0 : i32
    %c0_i32_0 = arith.constant 0 : i32
    %c0_i32_1 = arith.constant 0 : i32
    return %c0_i32, %c0_i32_0 : i32, i32
  }
  func.func @transform_4(%arg0: i32) -> (i32, i32) {
    %c0_i32 = arith.constant 0 : i32
    %c0_i32_0 = arith.constant 0 : i32
    %c0_i32_1 = arith.constant 0 : i32
    return %c0_i32, %c0_i32_0 : i32, i32
  }
  func.func @transform_5(%arg0: i32) -> (i32, i32) {
    %c0_i32 = arith.constant 0 : i32
    %c0_i32_0 = arith.constant 0 : i32
    return %arg0, %c0_i32 : i32, i32
  }
}

</mosaic_0001>

<llo_original>
// kernel: positionwise_ffn.1
$region0: #{positionwise_ffn.1}
  #allocation0 [shape = 'u32[]', space=smem, size = 0x4, offset = 0x4, fixed_abs, tag = 'smem constant byte address 0x4 - core index']
  #allocation1 [shape = 'u32[72,128]{1,0:T(1,128)}', space=vmem, size = 0x9000, scoped, tag = 'internal scratch']
  %s0 = inlined_call_operand.vmem [shape: f32[16,32], index: 0, kind: input, shape index: {}]
  %s1 = inlined_call_operand.vmem [shape: f32[32,64], index: 1, kind: input, shape index: {}]
  %s2 = inlined_call_operand.vmem [shape: f32[1,64], index: 2, kind: input, shape index: {}]
  %s3 = inlined_call_operand.vmem [shape: f32[64,32], index: 3, kind: input, shape index: {}]
  %s4 = inlined_call_operand.vmem [shape: f32[1,32], index: 4, kind: input, shape index: {}]
  %s5 = inlined_call_operand.hbm [shape: f32[16,32], index: 5, kind: output, shape index: {}]
  %s6 = sld [smem:[#allocation0]]
  $region30: #{positionwise_ffn.1} parent=0
    _
  %s8 = ssub.s32 1, %s6
  %s9 = scalar_select 0, %s8, %s6
  $region1: #{positionwise_ffn.1} parent=0
    #allocation2 [shape = 'u8[8192]{0}', space=vmem, size = 0x2000, scoped, tag = 'output window, operand 0, single buffered']
    #allocation3 [shape = 's32[1]{0}', space=sflag, size = 0x4, scoped, tag = 'scoped memory for positionwise_ffn.1']
    %10 = vsyncpa [#allocation3], 0
    // Predicated region
    $region2: #{positionwise_ffn.1} parent=1 // pred_check
      _
    $region3: #{positionwise_ffn.1} parent=1 // pred_check_branch
      %12 = sbr.rel (0) target = $region5
    $region4: #{positionwise_ffn.1} parent=1 // pred_region
      _
    $region5: #{positionwise_ffn.1} parent=1 // pred_fallthru
      _
    // Predicated region
    $region6: #{positionwise_ffn.1} parent=1 // pred_check
      _
    $region7: #{positionwise_ffn.1} parent=1 // pred_check_branch
      %14 = sbr.rel (0) target = $region9
    $region8: #{positionwise_ffn.1} parent=1 // pred_region
      _
    $region9: #{positionwise_ffn.1} parent=1 // pred_fallthru
      _
    // Predicated region
    $region10: #{positionwise_ffn.1} parent=1 // pred_check
      _
    $region11: #{positionwise_ffn.1} parent=1 // pred_check_branch
      %16 = sbr.rel (0) target = $region13
    $region12: #{positionwise_ffn.1} parent=1 // pred_region
      _
    $region13: #{positionwise_ffn.1} parent=1 // pred_fallthru
      _
    // Predicated region
    $region14: #{positionwise_ffn.1} parent=1 // pred_check
      _
    $region15: #{positionwise_ffn.1} parent=1 // pred_check_branch
      %18 = sbr.rel (0) target = $region17
    $region16: #{positionwise_ffn.1} parent=1 // pred_region
      _
    $region17: #{positionwise_ffn.1} parent=1 // pred_fallthru
      _
    // Predicated region
    $region18: #{positionwise_ffn.1} parent=1 // pred_check
      _
    $region19: #{positionwise_ffn.1} parent=1 // pred_check_branch
      %20 = sbr.rel (0) target = $region21
    $region20: #{positionwise_ffn.1} parent=1 // pred_region
      _
    $region21: #{positionwise_ffn.1} parent=1 // pred_fallthru
      _
    %v21 = vld [vmem:[%s0] sm:$0xff]
    %v22 = vld [vmem:[%s0 + $0x8] sm:$0xff]
    %v23 = vld [vmem:[%s1] sm:$0xff]
    %v24 = vld [vmem:[%s1 + $0x8] sm:$0xff]
    %v25 = vld [vmem:[%s1 + $0x10] sm:$0xff]
    %v26 = vld [vmem:[%s1 + $0x18] sm:$0xff]
    %v27 = vld [vmem:[%s2] sm:$0x1]
    %v29 = vperm.slane %v27, 0
    %vm31 = vcmask 261120
    %v33 = vsel %vm31, %v21, 0
    %v36 = vsel %vm31, %v22, 0
    %38 = vmatpush.msra.mxu0 0.0
    %39 = vmatpush.msra.mxu0 0.0
    %40 = vmatpush.msra.mxu0 0.0
    %41 = vmatpush.msra.mxu0 0.0
    %42 = vmatpush.msra.mxu0 0.0
    %43 = vmatpush.msra.mxu0 0.0
    %44 = vmatpush.msra.mxu0 0.0
    %45 = vmatpush.msra.mxu0 0.0
    %46 = vmatpush.msra.mxu0 0.0
    %47 = vmatpush.msra.mxu0 0.0
    %48 = vmatpush.msra.mxu0 0.0
    %49 = vmatpush.msra.mxu0 0.0
    %50 = vmatpush.msra.mxu0 %v26
    %51 = vmatpush.msra.mxu0 %v25
    %52 = vmatpush.msra.mxu0 %v24
    %53 = vmatpush.msra.mxu0 %v23
    %54 = vmatmul.f32.gmra.mxu0 %v33
    %v55 = vpop.f32.mrf.mxu0
    %v56 = vadd.f32 %v29, %v55
    %57 = vmatmul.f32.gmra.mxu0 %v36
    %v58 = vpop.f32.mrf.mxu0
    %v59 = vadd.f32 %v29, %v58
    %60 = vdwg.mxu0
    %v61 = vmax.f32 %v56, 0.0
    %v62 = vmax.f32 %v59, 0.0
    %v63 = vld [vmem:[%s3] sm:$0xff]
    %v64 = vld [vmem:[%s3 + $0x8] sm:$0xff]
    %v65 = vld [vmem:[%s3 + $0x10] sm:$0xff]
    %v66 = vld [vmem:[%s3 + $0x18] sm:$0xff]
    %v67 = vld [vmem:[%s3 + $0x20] sm:$0xff]
    %v68 = vld [vmem:[%s3 + $0x28] sm:$0xff]
    %v69 = vld [vmem:[%s3 + $0x30] sm:$0xff]
    %v70 = vld [vmem:[%s3 + $0x38] sm:$0xff]
    %v71 = vld [vmem:[%s4] sm:$0x1]
    %v73 = vperm.slane %v71, 0
    %vm75 = vcmask 523264
    %v77 = vsel %vm75, %v61, 0
    %v80 = vsel %vm75, %v62, 0
    %82 = vmatpush.msra.mxu0 0.0
    %83 = vmatpush.msra.mxu0 0.0
    %84 = vmatpush.msra.mxu0 0.0
    %85 = vmatpush.msra.mxu0 0.0
    %86 = vmatpush.msra.mxu0 0.0
    %87 = vmatpush.msra.mxu0 0.0
    %88 = vmatpush.msra.mxu0 0.0
    %89 = vmatpush.msra.mxu0 0.0
    %90 = vmatpush.msra.mxu0 %v70
    %91 = vmatpush.msra.mxu0 %v69
    %92 = vmatpush.msra.mxu0 %v68
    %93 = vmatpush.msra.mxu0 %v67
    %94 = vmatpush.msra.mxu0 %v66
    %95 = vmatpush.msra.mxu0 %v65
    %96 = vmatpush.msra.mxu0 %v64
    %97 = vmatpush.msra.mxu0 %v63
    %98 = vmatmul.f32.gmra.mxu0 %v77
    %v99 = vpop.f32.mrf.mxu0
    %v100 = vadd.f32 %v73, %v99
    %101 = vmatmul.f32.gmra.mxu0 %v80
    %v102 = vpop.f32.mrf.mxu0
    %v103 = vadd.f32 %v73, %v102
    %104 = vdwg.mxu0
    %105 = vst.msk [vmem:[#allocation2] sm:$0xff] %vm31, %v100
    %106 = vst.msk [vmem:[#allocation2 + $0x8] sm:$0xff] %vm31, %v103
    // Predicated region
    $region22: #{positionwise_ffn.1} parent=1 // pred_check
      _
    $region23: #{positionwise_ffn.1} parent=1 // pred_check_branch
      %108 = sbr.rel (0) target = $region25
    $region24: #{positionwise_ffn.1} parent=1 // pred_region
      %110 = vsyncadd [#allocation3], 0
      %s111 = sshll.u32 [#allocation2], 4
      %s112 = int_to_ptr.vmem [resolvable:$true] %s111
      %s113 = sshll.u32 %s5, 4
      %s114 = int_to_ptr.hbm [resolvable:$true] %s113
      %119 = dma.vmem_to_hbm [thread:$0]  %s112, 256, %s114, [#allocation3], 128, 128, 8
    $region25: #{positionwise_ffn.1} parent=1 // pred_fallthru
      _
    // Predicated region
    $region26: #{positionwise_ffn.1} parent=1 // pred_check
      _
    $region27: #{positionwise_ffn.1} parent=1 // pred_check_branch
      %121 = sbr.rel (0) target = $region29
    $region28: #{positionwise_ffn.1} parent=1 // pred_region
      %123 = dma.done [#allocation3], 256
    $region29: #{positionwise_ffn.1} parent=1 // pred_fallthru
      _
    %124 = vsyncpa [#allocation3], 1

</llo_original>
